<compile_context>
chip_gen: v7x
topology: tpu7x:2x2x1
jax: 0.10.0
libtpu: 0.0.40
codegen_flags: <defaults>
</compile_context>

<pallas_src>
import functools

import jax
import jax.numpy as jnp
from jax import lax
from jax.experimental import pallas as pl
from jax.experimental.pallas import tpu as pltpu


# ---------------- Pallas kernel ----------------

def _mm_bn_kernel(x_ref, w_ref, b_ref, *rest, relu, has_residual, has_shortcut):
    """out = act(x @ w + b [+ residual | + xs @ ws + bs]). BN is pre-folded into w/b."""
    o_ref = rest[-1]
    out = jnp.dot(x_ref[...], w_ref[...], preferred_element_type=jnp.float32)
    out = out + b_ref[...]                      # folded BN bias (f32)
    idx = 0
    if has_residual:                            # identity shortcut
        out = out + rest[idx][...].astype(jnp.float32)
        idx += 1
    if has_shortcut:                            # projection shortcut (1x1 conv + BN), fused
        xs_ref, ws_ref, bs_ref = rest[idx], rest[idx + 1], rest[idx + 2]
        out = out + jnp.dot(xs_ref[...], ws_ref[...],
                            preferred_element_type=jnp.float32) + bs_ref[...]
    if relu:
        out = jnp.maximum(out, 0.0)
    o_ref[...] = out.astype(o_ref.dtype)


def _round_up(x, m):
    return (x + m - 1) // m * m


def matmul_bn_pallas(x, w, b, *, relu, residual=None, shortcut=None,
                     tile_rows=512, out_dtype=jnp.float32, lane_multiple=128):
    """Fused (conv-as-matmul + folded BN [+ residual/shortcut] [+ relu]) pallas call.

    x        : (rows, Cin)       activations (rows = N * spatial, any dtype)
    w        : (Cin, Cout)       BN-folded weights
    b        : (Cout,)           BN-folded bias (f32)
    residual : (rows, Cout)      identity residual, added before relu
    shortcut : (xs, ws, bs)      projection shortcut computed in-kernel and added
    """
    assert not (residual is not None and shortcut is not None)
    rows, cin = x.shape
    cout = w.shape[1]

    cout_p = _round_up(cout, lane_multiple)          # lane-dense output stores
    tr = min(tile_rows, _round_up(rows, 8))          # sublane-aligned row tile
    rows_p = _round_up(rows, tr)

    def pad2(a, r, c):
        return jnp.pad(a, ((0, r - a.shape[0]), (0, c - a.shape[1])))

    args = [pad2(x, rows_p, cin),
            pad2(w, cin, cout_p),
            pad2(b.reshape(1, cout).astype(jnp.float32), 1, cout_p)]
    in_specs = [
        pl.BlockSpec((tr, cin), lambda i: (i, 0)),
        pl.BlockSpec((cin, cout_p), lambda i: (0, 0)),
        pl.BlockSpec((1, cout_p), lambda i: (0, 0)),
    ]

    has_res = residual is not None
    has_sc = shortcut is not None
    if has_res:
        args.append(pad2(residual, rows_p, cout_p))          # native dtype; cast in-kernel
        in_specs.append(pl.BlockSpec((tr, cout_p), lambda i: (i, 0)))
    if has_sc:
        xs, ws, bs = shortcut
        cin_s = xs.shape[1]
        args += [pad2(xs, rows_p, cin_s),
                 pad2(ws, cin_s, cout_p),
                 pad2(bs.reshape(1, cout).astype(jnp.float32), 1, cout_p)]
        in_specs += [pl.BlockSpec((tr, cin_s), lambda i: (i, 0)),
                     pl.BlockSpec((cin_s, cout_p), lambda i: (0, 0)),
                     pl.BlockSpec((1, cout_p), lambda i: (0, 0))]

    kernel = functools.partial(_mm_bn_kernel, relu=relu,
                               has_residual=has_res, has_shortcut=has_sc)

    out = pl.pallas_call(
        kernel,
        out_shape=jax.ShapeDtypeStruct((rows_p, cout_p), out_dtype),
        grid=(rows_p // tr,),
        in_specs=in_specs,
        out_specs=pl.BlockSpec((tr, cout_p), lambda i: (i, 0)),
        compiler_params=pltpu.CompilerParams(
            dimension_semantics=("parallel",),
            vmem_limit_bytes=64 * 1024 * 1024),
    )(*args)
    return out[:rows, :cout]


# ---------------- layout / folding glue (pure wrapper math, tiny) ----------------

def _bn_fold(bn, eps=1e-5):
    scale = bn["gamma"] * lax.rsqrt(bn["var"] + eps)
    bias = bn["beta"] - bn["mean"] * scale
    return scale, bias


def _fold_conv_bn_1x1(w_oihw, bn):
    scale, bias = _bn_fold(bn)
    cout, cin = w_oihw.shape[:2]
    w = w_oihw.reshape(cout, cin).T                       # (Cin, Cout)
    return w * scale[None, :], bias


def _fold_conv_bn_3x3(w_oihw, bn):
    scale, bias = _bn_fold(bn)
    cout, cin, kh, kw = w_oihw.shape
    w = jnp.transpose(w_oihw, (2, 3, 1, 0)).reshape(kh * kw * cin, cout)
    return w * scale[None, :], bias


def _im2col_3x3(img_nhwc, stride):
    """3x3/pad-1 taps folded into the channel (contraction) axis: (N*Ho*Wo, 9*C)."""
    n, h, w, c = img_nhwc.shape
    xp = jnp.pad(img_nhwc, ((0, 0), (1, 1), (1, 1), (0, 0)))
    ho = (h - 1) // stride + 1
    wo = (w - 1) // stride + 1
    taps = []
    for dy in range(3):
        for dx in range(3):
            taps.append(xp[:, dy:dy + ho * stride:stride,
                           dx:dx + wo * stride:stride, :])
    cols = jnp.concatenate(taps, axis=-1)                 # (N, Ho, Wo, 9*C)
    return cols.reshape(n * ho * wo, 9 * c), ho, wo


# ---------------- module: params + forward ----------------

EXPANSION = 4


def init_bottleneck_params(key, in_planes, planes, stride):
    keys = jax.random.split(key, 8)

    def conv_w(k, cout, cin, ksz):
        fan_in = cin * ksz * ksz
        bound = 1.0 / (fan_in ** 0.5)
        return jax.random.uniform(k, (cout, cin, ksz, ksz), jnp.float32, -bound, bound)

    def bn_p(k, c):
        kg, kb, km, kv = jax.random.split(k, 4)
        return dict(
            gamma=1.0 + 0.1 * jax.random.normal(kg, (c,), jnp.float32),
            beta=0.1 * jax.random.normal(kb, (c,), jnp.float32),
            mean=0.1 * jax.random.normal(km, (c,), jnp.float32),
            var=jax.random.uniform(kv, (c,), jnp.float32, 0.5, 1.5),
        )

    cexp = EXPANSION * planes
    params = dict(
        conv1=conv_w(keys[0], planes, in_planes, 1), bn1=bn_p(keys[1], planes),
        conv2=conv_w(keys[2], planes, planes, 3),    bn2=bn_p(keys[3], planes),
        conv3=conv_w(keys[4], cexp, planes, 1),      bn3=bn_p(keys[5], cexp),
    )
    if stride != 1 or in_planes != cexp:
        params["conv_sc"] = conv_w(keys[6], cexp, in_planes, 1)
        params["bn_sc"] = bn_p(keys[7], cexp)
    return params


def bottleneck_forward(params, x_nchw, *, stride,
                       compute_dtype=jnp.float32, tile_rows=512):
    """Bottleneck forward. compute_dtype=bf16 halves HBM traffic (f32 accumulation)."""
    cdt = compute_dtype
    x = jnp.transpose(x_nchw, (0, 2, 3, 1))               # NCHW -> NHWC
    n, h, w, cin = x.shape
    planes = params["conv1"].shape[0]
    cexp = params["conv3"].shape[0]

    w1, b1 = _fold_conv_bn_1x1(params["conv1"], params["bn1"])
    w2, b2 = _fold_conv_bn_3x3(params["conv2"], params["bn2"])
    w3, b3 = _fold_conv_bn_1x1(params["conv3"], params["bn3"])

    # conv1 (1x1) + bn1 + relu : single matmul over (N*H*W, Cin)
    x_flat = x.reshape(n * h * w, cin).astype(cdt)
    out1 = matmul_bn_pallas(x_flat, w1.astype(cdt), b1, relu=True,
                            out_dtype=cdt, tile_rows=tile_rows)

    # conv2 (3x3, stride, pad 1) + bn2 + relu : taps folded into contraction
    cols2, ho, wo = _im2col_3x3(out1.reshape(n, h, w, planes), stride)
    out2 = matmul_bn_pallas(cols2, w2.astype(cdt), b2, relu=True,
                            out_dtype=cdt, tile_rows=tile_rows)

    # conv3 (1x1) + bn3 + shortcut + relu : shortcut fused into the same kernel
    if "conv_sc" in params:
        ws, bs = _fold_conv_bn_1x1(params["conv_sc"], params["bn_sc"])
        xs = x[:, ::stride, ::stride, :].reshape(n * ho * wo, cin).astype(cdt)
        out3 = matmul_bn_pallas(out2, w3.astype(cdt), b3, relu=True,
                                shortcut=(xs, ws.astype(cdt), bs),
                                out_dtype=jnp.float32, tile_rows=tile_rows)
    else:  # identity shortcut (stride==1, cin==cexp); pass in native dtype
        res = x.reshape(n * h * w, cexp)
        out3 = matmul_bn_pallas(out2, w3.astype(cdt), b3, relu=True,
                                residual=res,
                                out_dtype=jnp.float32, tile_rows=tile_rows)

    return jnp.transpose(out3.reshape(n, ho, wo, cexp), (0, 3, 1, 2))  # -> NCHW


# ---------------- pure-JAX reference (inference-mode BN) ----------------

def reference_forward(params, x_nchw, *, stride, eps=1e-5):
    x = jnp.transpose(x_nchw, (0, 2, 3, 1)).astype(jnp.float32)

    def conv(z, w_oihw, s, pad):
        return lax.conv_general_dilated(
            z, jnp.transpose(w_oihw, (2, 3, 1, 0)),
            window_strides=(s, s), padding=[(pad, pad), (pad, pad)],
            dimension_numbers=("NHWC", "HWIO", "NHWC"),
            precision=lax.Precision.HIGHEST)

    def bn(z, p):
        sc = p["gamma"] / jnp.sqrt(p["var"] + eps)
        return z * sc + (p["beta"] - p["mean"] * sc)

    out = jax.nn.relu(bn(conv(x, params["conv1"], 1, 0), params["bn1"]))
    out = jax.nn.relu(bn(conv(out, params["conv2"], stride, 1), params["bn2"]))
    out = bn(conv(out, params["conv3"], 1, 0), params["bn3"])
    if "conv_sc" in params:
        sc_out = bn(conv(x, params["conv_sc"], stride, 0), params["bn_sc"])
    else:
        sc_out = x
    out = jax.nn.relu(out + sc_out)
    return jnp.transpose(out, (0, 3, 1, 2))


if __name__ == "__main__":
    key = jax.random.PRNGKey(0)
    kp1, kp2, kx1, kx2 = jax.random.split(key, 4)

    # Config 1: projection shortcut (stride=2, in_planes != expansion*planes).
    in_planes, planes, stride = 4, 4, 2
    params = init_bottleneck_params(kp1, in_planes, planes, stride)
    x = jax.random.normal(kx1, (2, in_planes, 16, 16), jnp.float32)

    out = jax.block_until_ready(bottleneck_forward(params, x, stride=stride))
    ref = reference_forward(params, x, stride=stride)
    assert out.shape == (2, EXPANSION * planes, 8, 8), out.shape
    err = float(jnp.max(jnp.abs(out - ref)))
    assert jnp.allclose(out, ref, rtol=2e-2, atol=2e-2), err

    # Config 2: identity shortcut (stride=1, in_planes == expansion*planes).
    in_planes2, planes2, stride2 = 16, 4, 1
    params2 = init_bottleneck_params(kp2, in_planes2, planes2, stride2)
    x2 = jax.random.normal(kx2, (2, in_planes2, 8, 8), jnp.float32)

    out2 = jax.block_until_ready(bottleneck_forward(params2, x2, stride=stride2))
    ref2 = reference_forward(params2, x2, stride=stride2)
    assert out2.shape == (2, 16, 8, 8), out2.shape
    err2 = float(jnp.max(jnp.abs(out2 - ref2)))
    assert jnp.allclose(out2, ref2, rtol=2e-2, atol=2e-2), err2

    # bf16 storage/compute path (perf mode on v6e/v7x); f32 accumulation in-kernel.
    out_bf = jax.block_until_ready(
        bottleneck_forward(params, x, stride=stride, compute_dtype=jnp.bfloat16))
    err_bf = float(jnp.max(jnp.abs(out_bf - ref)))
    assert err_bf < 0.15, err_bf

    print("KERNEL_OK")
</pallas_src>

<mosaic_0001>
module attributes {stable_mosaic.version = 11 : i64} {
  func.func @_mm_bn_kernel(%arg0: i32, %arg1: memref<512x4xf32, #tpu.memory_space<vmem>>, %arg2: memref<4x128xf32, #tpu.memory_space<vmem>>, %arg3: memref<1x128xf32, #tpu.memory_space<vmem>>, %arg4: memref<512x128xf32, #tpu.memory_space<vmem>>) attributes {dimension_semantics = [#tpu.dimension_semantics<parallel>], iteration_bounds = array<i64: 1>, scalar_prefetch = 0 : i64, scratch_operands = 0 : i64, tpu.core_type = #tpu.core_type<tc>, window_params = [{transform_indices = @transform_0, window_bounds = array<i64: 512, 4>}, {pipeline_mode = #tpu.pipeline_mode<synchronous>, transform_indices = @transform_1, window_bounds = array<i64: 4, 128>}, {pipeline_mode = #tpu.pipeline_mode<synchronous>, transform_indices = @transform_2, window_bounds = array<i64: 1, 128>}, {transform_indices = @transform_3, window_bounds = array<i64: 512, 128>}]} {
    %c0 = arith.constant 0 : index
    %c0_0 = arith.constant 0 : index
    %0 = vector.load %arg1[%c0, %c0_0] : memref<512x4xf32, #tpu.memory_space<vmem>>, vector<512x4xf32>
    %c0_1 = arith.constant 0 : index
    %c0_2 = arith.constant 0 : index
    %1 = vector.load %arg2[%c0_1, %c0_2] : memref<4x128xf32, #tpu.memory_space<vmem>>, vector<4x128xf32>
    %cst = arith.constant dense<0.000000e+00> : vector<512x128xf32>
    %2 = tpu.matmul %0, %1, %cst {dimension_numbers = #tpu.dot_dimension_numbers<[1], [0], [0], [1], [0, 0, 1, 1], [], []>} : vector<512x4xf32>, vector<4x128xf32>, vector<512x128xf32> -> vector<512x128xf32>
    %c0_3 = arith.constant 0 : index
    %c0_4 = arith.constant 0 : index
    %3 = vector.load %arg3[%c0_3, %c0_4] : memref<1x128xf32, #tpu.memory_space<vmem>>, vector<1x128xf32>
    %4 = vector.broadcast %3 : vector<1x128xf32> to vector<512x128xf32>
    %5 = arith.addf %2, %4 : vector<512x128xf32>
    %cst_5 = arith.constant 0.000000e+00 : f32
    %6 = vector.broadcast %cst_5 : f32 to vector<512x128xf32>
    %7 = arith.maximumf %5, %6 : vector<512x128xf32>
    %c0_6 = arith.constant 0 : index
    %c0_7 = arith.constant 0 : index
    %8 = vector.load %arg4[%c0_6, %c0_7] : memref<512x128xf32, #tpu.memory_space<vmem>>, vector<512x128xf32>
    tpu.vector_store %arg4[%c0_6, %c0_7], %7 {strides = array<i32>} : memref<512x128xf32, #tpu.memory_space<vmem>>, vector<512x128xf32>,
    return
  }
  func.func @transform_0(%arg0: i32) -> (i32, i32) {
    %c0_i32 = arith.constant 0 : i32
    %c0_i32_0 = arith.constant 0 : i32
    return %arg0, %c0_i32 : i32, i32
  }
  func.func @transform_1(%arg0: i32) -> (i32, i32) {
    %c0_i32 = arith.constant 0 : i32
    %c0_i32_0 = arith.constant 0 : i32
    %c0_i32_1 = arith.constant 0 : i32
    return %c0_i32, %c0_i32_0 : i32, i32
  }
  func.func @transform_2(%arg0: i32) -> (i32, i32) {
    %c0_i32 = arith.constant 0 : i32
    %c0_i32_0 = arith.constant 0 : i32
    %c0_i32_1 = arith.constant 0 : i32
    return %c0_i32, %c0_i32_0 : i32, i32
  }
  func.func @transform_3(%arg0: i32) -> (i32, i32) {
    %c0_i32 = arith.constant 0 : i32
    %c0_i32_0 = arith.constant 0 : i32
    return %arg0, %c0_i32 : i32, i32
  }
}

</mosaic_0001>

<llo_original>
// kernel: tpu_custom_call.1
$region0: #{tpu_custom_call.1}
  #allocation0 [shape = 'u32[]', space=smem, size = 0x4, offset = 0x4, fixed_abs, tag = 'smem constant byte address 0x4 - core index']
  #allocation1 [shape = 'u32[144,128]{1,0:T(1,128)}', space=vmem, size = 0x12000, scoped, tag = 'internal scratch']
  %s0 = inlined_call_operand.hbm [shape: f32[512,4], index: 0, kind: input, shape index: {}]
  %s1 = inlined_call_operand.hbm [shape: f32[4,128], index: 1, kind: input, shape index: {}]
  %s2 = inlined_call_operand.hbm [shape: f32[1,128], index: 2, kind: input, shape index: {}]
  %s3 = inlined_call_operand.hbm [shape: f32[512,128], index: 3, kind: output, shape index: {}]
  %s4 = sld [smem:[#allocation0]]
  $region34: #{tpu_custom_call.1} parent=0
    _
  %s6 = ssub.s32 1, %s4
  %s7 = scalar_select 0, %s6, %s4
  $region1: #{tpu_custom_call.1} parent=0
    #allocation2 [shape = 'u8[262144]{0}', space=vmem, size = 0x40000, scoped, tag = 'input window, operand 0, single buffered']
    #allocation3 [shape = 's32[1]{0}', space=sflag, size = 0x4, scoped, tag = 'scoped memory for tpu_custom_call.1']
    #allocation4 [shape = 's32[1]{0}', space=sflag, size = 0x4, scoped, tag = 'scoped memory for tpu_custom_call.1']
    #allocation5 [shape = 'u8[2048]{0}', space=vmem, size = 0x800, scoped, tag = 'input window, operand 1, single buffered']
    #allocation6 [shape = 's32[1]{0}', space=sflag, size = 0x4, scoped, tag = 'scoped memory for tpu_custom_call.1']
    #allocation7 [shape = 'u8[512]{0}', space=vmem, size = 0x400, scoped, tag = 'input window, operand 2, single buffered']
    #allocation8 [shape = 'u8[262144]{0}', space=vmem, size = 0x40000, scoped, tag = 'output window, operand 0, single buffered']
    %8 = vsyncpa [#allocation3], 0
    %9 = vsyncpa [#allocation6], 0
    %10 = vsyncpa [#allocation4], 0
    // Predicated region
    $region2: #{tpu_custom_call.1} parent=1 // pred_check
      _
    $region3: #{tpu_custom_call.1} parent=1 // pred_check_branch
      %12 = sbr.rel (0) target = $region5
    $region4: #{tpu_custom_call.1} parent=1 // pred_region
      %s14 = ssub.s32 8192, 8192
      %15 = vsyncadd [#allocation3], %s14
      %s16 = sshll.u32 [#allocation2], 4
      %s17 = int_to_ptr.vmem [resolvable:$true] %s16
      %22 = dma.hbm_to_vmem [thread:$0]  %s0, 8192, %s17, [#allocation3], 128, 128, 8
    $region5: #{tpu_custom_call.1} parent=1 // pred_fallthru
      _
    // Predicated region
    $region6: #{tpu_custom_call.1} parent=1 // pred_check
      _
    $region7: #{tpu_custom_call.1} parent=1 // pred_check_branch
      %24 = sbr.rel (0) target = $region9
    $region8: #{tpu_custom_call.1} parent=1 // pred_region
      %s26 = ssub.s32 64, 64
      %27 = vsyncadd [#allocation6], %s26
      %s29 = sshll.u32 [#allocation5], 4
      %s30 = int_to_ptr.vmem [resolvable:$true] %s29
      %32 = dma.hbm_to_vmem [thread:$0]  %s1, 64, %s30, [#allocation6]
    $region9: #{tpu_custom_call.1} parent=1 // pred_fallthru
      _
    // Predicated region
    $region10: #{tpu_custom_call.1} parent=1 // pred_check
      _
    $region11: #{tpu_custom_call.1} parent=1 // pred_check_branch
      %34 = sbr.rel (0) target = $region13
    $region12: #{tpu_custom_call.1} parent=1 // pred_region
      %s36 = ssub.s32 16, 16
      %37 = vsyncadd [#allocation6], %s36
      %s39 = sshll.u32 [#allocation7], 4
      %s40 = int_to_ptr.vmem [resolvable:$true] %s39
      %42 = dma.hbm_to_vmem [thread:$0]  %s2, 16, %s40, [#allocation6]
    $region13: #{tpu_custom_call.1} parent=1 // pred_fallthru
      _
    // Predicated region
    $region14: #{tpu_custom_call.1} parent=1 // pred_check
      _
    $region15: #{tpu_custom_call.1} parent=1 // pred_check_branch
      %44 = sbr.rel (0) target = $region17
    $region16: #{tpu_custom_call.1} parent=1 // pred_region
      %45 = dma.done [#allocation3], 8192
    $region17: #{tpu_custom_call.1} parent=1 // pred_fallthru
      _
    // Predicated region
    $region18: #{tpu_custom_call.1} parent=1 // pred_check
      _
    $region19: #{tpu_custom_call.1} parent=1 // pred_check_branch
      %47 = sbr.rel (0) target = $region21
    $region20: #{tpu_custom_call.1} parent=1 // pred_region
      %48 = dma.done [#allocation6], 64
    $region21: #{tpu_custom_call.1} parent=1 // pred_fallthru
      _
    // Predicated region
    $region22: #{tpu_custom_call.1} parent=1 // pred_check
      _
    $region23: #{tpu_custom_call.1} parent=1 // pred_check_branch
      %50 = sbr.rel (0) target = $region25
    $region24: #{tpu_custom_call.1} parent=1 // pred_region
      %51 = dma.done [#allocation6], 16
    $region25: #{tpu_custom_call.1} parent=1 // pred_fallthru
      _
    %v52 = vld [vmem:[#allocation2] sm:$0xff]
    %v53 = vld [vmem:[#allocation2 + $0x8] sm:$0xff]
    %v54 = vld [vmem:[#allocation2 + $0x10] sm:$0xff]
    %v55 = vld [vmem:[#allocation2 + $0x18] sm:$0xff]
    %v56 = vld [vmem:[#allocation2 + $0x20] sm:$0xff]
    %v57 = vld [vmem:[#allocation2 + $0x28] sm:$0xff]
    %v58 = vld [vmem:[#allocation2 + $0x30] sm:$0xff]
    %v59 = vld [vmem:[#allocation2 + $0x38] sm:$0xff]
    %v60 = vld [vmem:[#allocation2 + $0x40] sm:$0xff]
    %v61 = vld [vmem:[#allocation2 + $0x48] sm:$0xff]
    %v62 = vld [vmem:[#allocation2 + $0x50] sm:$0xff]
    %v63 = vld [vmem:[#allocation2 + $0x58] sm:$0xff]
    %v64 = vld [vmem:[#allocation2 + $0x60] sm:$0xff]
    %v65 = vld [vmem:[#allocation2 + $0x68] sm:$0xff]
    %v66 = vld [vmem:[#allocation2 + $0x70] sm:$0xff]
    %v67 = vld [vmem:[#allocation2 + $0x78] sm:$0xff]
    %v68 = vld [vmem:[#allocation2 + $0x80] sm:$0xff]
    %v69 = vld [vmem:[#allocation2 + $0x88] sm:$0xff]
    %v70 = vld [vmem:[#allocation2 + $0x90] sm:$0xff]
    %v71 = vld [vmem:[#allocation2 + $0x98] sm:$0xff]
    %v72 = vld [vmem:[#allocation2 + $0xa0] sm:$0xff]
    %v73 = vld [vmem:[#allocation2 + $0xa8] sm:$0xff]
    %v74 = vld [vmem:[#allocation2 + $0xb0] sm:$0xff]
    %v75 = vld [vmem:[#allocation2 + $0xb8] sm:$0xff]
    %v76 = vld [vmem:[#allocation2 + $0xc0] sm:$0xff]
    %v77 = vld [vmem:[#allocation2 + $0xc8] sm:$0xff]
    %v78 = vld [vmem:[#allocation2 + $0xd0] sm:$0xff]
    %v79 = vld [vmem:[#allocation2 + $0xd8] sm:$0xff]
    %v80 = vld [vmem:[#allocation2 + $0xe0] sm:$0xff]
    %v81 = vld [vmem:[#allocation2 + $0xe8] sm:$0xff]
    %v82 = vld [vmem:[#allocation2 + $0xf0] sm:$0xff]
    %v83 = vld [vmem:[#allocation2 + $0xf8] sm:$0xff]
    %v84 = vld [vmem:[#allocation2 + $0x100] sm:$0xff]
    %v85 = vld [vmem:[#allocation2 + $0x108] sm:$0xff]
    %v86 = vld [vmem:[#allocation2 + $0x110] sm:$0xff]
    %v87 = vld [vmem:[#allocation2 + $0x118] sm:$0xff]
    %v88 = vld [vmem:[#allocation2 + $0x120] sm:$0xff]
    %v89 = vld [vmem:[#allocation2 + $0x128] sm:$0xff]
    %v90 = vld [vmem:[#allocation2 + $0x130] sm:$0xff]
    %v91 = vld [vmem:[#allocation2 + $0x138] sm:$0xff]
    %v92 = vld [vmem:[#allocation2 + $0x140] sm:$0xff]
    %v93 = vld [vmem:[#allocation2 + $0x148] sm:$0xff]
    %v94 = vld [vmem:[#allocation2 + $0x150] sm:$0xff]
    %v95 = vld [vmem:[#allocation2 + $0x158] sm:$0xff]
    %v96 = vld [vmem:[#allocation2 + $0x160] sm:$0xff]
    %v97 = vld [vmem:[#allocation2 + $0x168] sm:$0xff]
    %v98 = vld [vmem:[#allocation2 + $0x170] sm:$0xff]
    %v99 = vld [vmem:[#allocation2 + $0x178] sm:$0xff]
    %v100 = vld [vmem:[#allocation2 + $0x180] sm:$0xff]
    %v101 = vld [vmem:[#allocation2 + $0x188] sm:$0xff]
    %v102 = vld [vmem:[#allocation2 + $0x190] sm:$0xff]
    %v103 = vld [vmem:[#allocation2 + $0x198] sm:$0xff]
    %v104 = vld [vmem:[#allocation2 + $0x1a0] sm:$0xff]
    %v105 = vld [vmem:[#allocation2 + $0x1a8] sm:$0xff]
    %v106 = vld [vmem:[#allocation2 + $0x1b0] sm:$0xff]
    %v107 = vld [vmem:[#allocation2 + $0x1b8] sm:$0xff]
    %v108 = vld [vmem:[#allocation2 + $0x1c0] sm:$0xff]
    %v109 = vld [vmem:[#allocation2 + $0x1c8] sm:$0xff]
    %v110 = vld [vmem:[#allocation2 + $0x1d0] sm:$0xff]
    %v111 = vld [vmem:[#allocation2 + $0x1d8] sm:$0xff]
    %v112 = vld [vmem:[#allocation2 + $0x1e0] sm:$0xff]
    %v113 = vld [vmem:[#allocation2 + $0x1e8] sm:$0xff]
    %v114 = vld [vmem:[#allocation2 + $0x1f0] sm:$0xff]
    %v115 = vld [vmem:[#allocation2 + $0x1f8] sm:$0xff]
    %v116 = vld [vmem:[#allocation5] sm:$0xf]
    %v117 = vld [vmem:[#allocation7] sm:$0x1]
    %v119 = vlaneseq
    %v120 = vshrl.u32 %v119, 7
    %v121 = vsub.s32 0, %v120
    %v122 = vrot.slane %v117, %v121
    %vm124 = vcmask 31744
    %v126 = vsel %vm124, %v52, 0
    %v129 = vsel %vm124, %v53, 0
    %v132 = vsel %vm124, %v54, 0
    %v135 = vsel %vm124, %v55, 0
    %v138 = vsel %vm124, %v56, 0
    %v141 = vsel %vm124, %v57, 0
    %v144 = vsel %vm124, %v58, 0
    %v147 = vsel %vm124, %v59, 0
    %v150 = vsel %vm124, %v60, 0
    %v153 = vsel %vm124, %v61, 0
    %v156 = vsel %vm124, %v62, 0
    %v159 = vsel %vm124, %v63, 0
    %v162 = vsel %vm124, %v64, 0
    %v165 = vsel %vm124, %v65, 0
    %v168 = vsel %vm124, %v66, 0
    %v171 = vsel %vm124, %v67, 0
    %v174 = vsel %vm124, %v68, 0
    %v177 = vsel %vm124, %v69, 0
    %v180 = vsel %vm124, %v70, 0
    %v183 = vsel %vm124, %v71, 0
    %v186 = vsel %vm124, %v72, 0
    %v189 = vsel %vm124, %v73, 0
    %v192 = vsel %vm124, %v74, 0
    %v195 = vsel %vm124, %v75, 0
    %v198 = vsel %vm124, %v76, 0
    %v201 = vsel %vm124, %v77, 0
    %v204 = vsel %vm124, %v78, 0
    %v207 = vsel %vm124, %v79, 0
    %v210 = vsel %vm124, %v80, 0
    %v213 = vsel %vm124, %v81, 0
    %v216 = vsel %vm124, %v82, 0
    %v219 = vsel %vm124, %v83, 0
    %v222 = vsel %vm124, %v84, 0
    %v225 = vsel %vm124, %v85, 0
    %v228 = vsel %vm124, %v86, 0
    %v231 = vsel %vm124, %v87, 0
    %v234 = vsel %vm124, %v88, 0
    %v237 = vsel %vm124, %v89, 0
    %v240 = vsel %vm124, %v90, 0
    %v243 = vsel %vm124, %v91, 0
    %v246 = vsel %vm124, %v92, 0
    %v249 = vsel %vm124, %v93, 0
    %v252 = vsel %vm124, %v94, 0
    %v255 = vsel %vm124, %v95, 0
    %v258 = vsel %vm124, %v96, 0
    %v261 = vsel %vm124, %v97, 0
    %v264 = vsel %vm124, %v98, 0
    %v267 = vsel %vm124, %v99, 0
    %v270 = vsel %vm124, %v100, 0
    %v273 = vsel %vm124, %v101, 0
    %v276 = vsel %vm124, %v102, 0
    %v279 = vsel %vm124, %v103, 0
    %v282 = vsel %vm124, %v104, 0
    %v285 = vsel %vm124, %v105, 0
    %v288 = vsel %vm124, %v106, 0
    %v291 = vsel %vm124, %v107, 0
    %v294 = vsel %vm124, %v108, 0
    %v297 = vsel %vm124, %v109, 0
    %v300 = vsel %vm124, %v110, 0
    %v303 = vsel %vm124, %v111, 0
    %v306 = vsel %vm124, %v112, 0
    %v309 = vsel %vm124, %v113, 0
    %v312 = vsel %vm124, %v114, 0
    %v315 = vsel %vm124, %v115, 0
    %vm317 = vcmask 1043456
    %v319 = vsel %vm317, %v116, 0
    %321 = vmatprep.subr.mxu0 0.0
    %322 = vmatpush1.msra.mxu0 %v319
    %323 = vmatprep.subr.mxu0 0.0
    %324 = vmatpush1.msra.mxu0 0.0
    %325 = vmatprep.subr.mxu0 0.0
    %326 = vmatpush1.msra.mxu0 0.0
    %327 = vmatprep.subr.mxu0 0.0
    %328 = vmatpush1.msra.mxu0 0.0
    %329 = vmatprep.subr.mxu0 0.0
    %330 = vmatpush1.msra.mxu0 0.0
    %331 = vmatprep.subr.mxu0 0.0
    %332 = vmatpush1.msra.mxu0 0.0
    %333 = vmatprep.subr.mxu0 0.0
    %334 = vmatpush1.msra.mxu0 0.0
    %335 = vmatprep.subr.mxu0 0.0
    %336 = vmatpush1.msra.mxu0 0.0
    %337 = vmatprep.subr.mxu0 0.0
    %338 = vmatpush1.msra.mxu0 0.0
    %339 = vmatprep.subr.mxu0 0.0
    %340 = vmatpush1.msra.mxu0 0.0
    %341 = vmatprep.subr.mxu0 0.0
    %342 = vmatpush1.msra.mxu0 0.0
    %343 = vmatprep.subr.mxu0 0.0
    %344 = vmatpush1.msra.mxu0 0.0
    %345 = vmatprep.subr.mxu0 0.0
    %346 = vmatpush1.msra.mxu0 0.0
    %347 = vmatprep.subr.mxu0 0.0
    %348 = vmatpush1.msra.mxu0 0.0
    %349 = vmatprep.subr.mxu0 0.0
    %350 = vmatpush1.msra.mxu0 0.0
    %351 = vmatprep.subr.mxu0 0.0
    %352 = vmatpush1.msra.mxu0 0.0
    %353 = vmatprep.subr.mxu0 0.0
    %354 = vmatpush1.msra.mxu0 0.0
    %355 = vmatprep.subr.mxu0 0.0
    %356 = vmatpush1.msra.mxu0 0.0
    %357 = vmatprep.subr.mxu0 0.0
    %358 = vmatpush1.msra.mxu0 0.0
    %359 = vmatprep.subr.mxu0 0.0
    %360 = vmatpush1.msra.mxu0 0.0
    %361 = vmatprep.subr.mxu0 0.0
    %362 = vmatpush1.msra.mxu0 0.0
    %363 = vmatprep.subr.mxu0 0.0
    %364 = vmatpush1.msra.mxu0 0.0
    %365 = vmatprep.subr.mxu0 0.0
    %366 = vmatpush1.msra.mxu0 0.0
    %367 = vmatprep.subr.mxu0 0.0
    %368 = vmatpush1.msra.mxu0 0.0
    %369 = vmatprep.subr.mxu0 0.0
    %370 = vmatpush1.msra.mxu0 0.0
    %371 = vmatprep.subr.mxu0 0.0
    %372 = vmatpush1.msra.mxu0 0.0
    %373 = vmatprep.subr.mxu0 0.0
    %374 = vmatpush1.msra.mxu0 0.0
    %375 = vmatprep.subr.mxu0 0.0
    %376 = vmatpush1.msra.mxu0 0.0
    %377 = vmatprep.subr.mxu0 0.0
    %378 = vmatpush1.msra.mxu0 0.0
    %379 = vmatprep.subr.mxu0 0.0
    %380 = vmatpush1.msra.mxu0 0.0
    %381 = vmatprep.subr.mxu0 0.0
    %382 = vmatpush1.msra.mxu0 0.0
    %383 = vmatprep.subr.mxu0 0.0
    %384 = vmatpush1.msra.mxu0 0.0
    %385 = vmatprep.mubr.f32.mxu0 0.0
    %386 = vmatmul.mubr.f32.gmra.mrb[0].mxu0 %v126
    %v387 = vpop.f32.mrb[0].mxu0
    %v388 = vadd.f32 %v122, %v387
    %v389 = vpop.f32.mrb[0].mxu0
    %390 = vmatprep.mubr.f32.mxu0 0.0
    %391 = vmatmul.mubr.f32.gmra.mrb[0].mxu0 %v129
    %v392 = vpop.f32.mrb[0].mxu0
    %v393 = vadd.f32 %v122, %v392
    %v394 = vpop.f32.mrb[0].mxu0
    %395 = vmatprep.mubr.f32.mxu0 0.0
    %396 = vmatmul.mubr.f32.gmra.mrb[0].mxu0 %v132
    %v397 = vpop.f32.mrb[0].mxu0
    %v398 = vadd.f32 %v122, %v397
    %v399 = vpop.f32.mrb[0].mxu0
    %400 = vmatprep.mubr.f32.mxu0 0.0
    %401 = vmatmul.mubr.f32.gmra.mrb[0].mxu0 %v135
    %v402 = vpop.f32.mrb[0].mxu0
    %v403 = vadd.f32 %v122, %v402
    %v404 = vpop.f32.mrb[0].mxu0
    %405 = vmatprep.mubr.f32.mxu0 0.0
    %406 = vmatmul.mubr.f32.gmra.mrb[0].mxu0 %v138
    %v407 = vpop.f32.mrb[0].mxu0
    %v408 = vadd.f32 %v122, %v407
    %v409 = vpop.f32.mrb[0].mxu0
    %410 = vmatprep.mubr.f32.mxu0 0.0
    %411 = vmatmul.mubr.f32.gmra.mrb[0].mxu0 %v141
    %v412 = vpop.f32.mrb[0].mxu0
    %v413 = vadd.f32 %v122, %v412
    %v414 = vpop.f32.mrb[0].mxu0
    %415 = vmatprep.mubr.f32.mxu0 0.0
    %416 = vmatmul.mubr.f32.gmra.mrb[0].mxu0 %v144
    %v417 = vpop.f32.mrb[0].mxu0
    %v418 = vadd.f32 %v122, %v417
    %v419 = vpop.f32.mrb[0].mxu0
    %420 = vmatprep.mubr.f32.mxu0 0.0
    %421 = vmatmul.mubr.f32.gmra.mrb[0].mxu0 %v147
    %v422 = vpop.f32.mrb[0].mxu0
    %v423 = vadd.f32 %v122, %v422
    %v424 = vpop.f32.mrb[0].mxu0
    %425 = vmatprep.mubr.f32.mxu0 0.0
    %426 = vmatmul.mubr.f32.gmra.mrb[0].mxu0 %v150
    %v427 = vpop.f32.mrb[0].mxu0
    %v428 = vadd.f32 %v122, %v427
    %v429 = vpop.f32.mrb[0].mxu0
    %430 = vmatprep.mubr.f32.mxu0 0.0
    %431 = vmatmul.mubr.f32.gmra.mrb[0].mxu0 %v153
    %v432 = vpop.f32.mrb[0].mxu0
    %v433 = vadd.f32 %v122, %v432
    %v434 = vpop.f32.mrb[0].mxu0
    %435 = vmatprep.mubr.f32.mxu0 0.0
    %436 = vmatmul.mubr.f32.gmra.mrb[0].mxu0 %v156
    %v437 = vpop.f32.mrb[0].mxu0
    %v438 = vadd.f32 %v122, %v437
    %v439 = vpop.f32.mrb[0].mxu0
    %440 = vmatprep.mubr.f32.mxu0 0.0
    %441 = vmatmul.mubr.f32.gmra.mrb[0].mxu0 %v159
    %v442 = vpop.f32.mrb[0].mxu0
    %v443 = vadd.f32 %v122, %v442
    %v444 = vpop.f32.mrb[0].mxu0
    %445 = vmatprep.mubr.f32.mxu0 0.0
    %446 = vmatmul.mubr.f32.gmra.mrb[0].mxu0 %v162
    %v447 = vpop.f32.mrb[0].mxu0
    %v448 = vadd.f32 %v122, %v447
    %v449 = vpop.f32.mrb[0].mxu0
    %450 = vmatprep.mubr.f32.mxu0 0.0
    %451 = vmatmul.mubr.f32.gmra.mrb[0].mxu0 %v165
    %v452 = vpop.f32.mrb[0].mxu0
    %v453 = vadd.f32 %v122, %v452
    %v454 = vpop.f32.mrb[0].mxu0
    %455 = vmatprep.mubr.f32.mxu0 0.0
    %456 = vmatmul.mubr.f32.gmra.mrb[0].mxu0 %v168
    %v457 = vpop.f32.mrb[0].mxu0
    %v458 = vadd.f32 %v122, %v457
    %v459 = vpop.f32.mrb[0].mxu0
    %460 = vmatprep.mubr.f32.mxu0 0.0
    %461 = vmatmul.mubr.f32.gmra.mrb[0].mxu0 %v171
    %v462 = vpop.f32.mrb[0].mxu0
    %v463 = vadd.f32 %v122, %v462
    %v464 = vpop.f32.mrb[0].mxu0
    %465 = vmatprep.mubr.f32.mxu0 0.0
    %466 = vmatmul.mubr.f32.gmra.mrb[0].mxu0 %v174
    %v467 = vpop.f32.mrb[0].mxu0
    %v468 = vadd.f32 %v122, %v467
    %v469 = vpop.f32.mrb[0].mxu0
    %470 = vmatprep.mubr.f32.mxu0 0.0
    %471 = vmatmul.mubr.f32.gmra.mrb[0].mxu0 %v177
    %v472 = vpop.f32.mrb[0].mxu0
    %v473 = vadd.f32 %v122, %v472
    %v474 = vpop.f32.mrb[0].mxu0
    %475 = vmatprep.mubr.f32.mxu0 0.0
    %476 = vmatmul.mubr.f32.gmra.mrb[0].mxu0 %v180
    %v477 = vpop.f32.mrb[0].mxu0
    %v478 = vadd.f32 %v122, %v477
    %v479 = vpop.f32.mrb[0].mxu0
    %480 = vmatprep.mubr.f32.mxu0 0.0
    %481 = vmatmul.mubr.f32.gmra.mrb[0].mxu0 %v183
    %v482 = vpop.f32.mrb[0].mxu0
    %v483 = vadd.f32 %v122, %v482
    %v484 = vpop.f32.mrb[0].mxu0
    %485 = vmatprep.mubr.f32.mxu0 0.0
    %486 = vmatmul.mubr.f32.gmra.mrb[0].mxu0 %v186
    %v487 = vpop.f32.mrb[0].mxu0
    %v488 = vadd.f32 %v122, %v487
    %v489 = vpop.f32.mrb[0].mxu0
    %490 = vmatprep.mubr.f32.mxu0 0.0
    %491 = vmatmul.mubr.f32.gmra.mrb[0].mxu0 %v189
    %v492 = vpop.f32.mrb[0].mxu0
    %v493 = vadd.f32 %v122, %v492
    %v494 = vpop.f32.mrb[0].mxu0
    %495 = vmatprep.mubr.f32.mxu0 0.0
    %496 = vmatmul.mubr.f32.gmra.mrb[0].mxu0 %v192
    %v497 = vpop.f32.mrb[0].mxu0
    %v498 = vadd.f32 %v122, %v497
    %v499 = vpop.f32.mrb[0].mxu0
    %500 = vmatprep.mubr.f32.mxu0 0.0
    %501 = vmatmul.mubr.f32.gmra.mrb[0].mxu0 %v195
    %v502 = vpop.f32.mrb[0].mxu0
    %v503 = vadd.f32 %v122, %v502
    %v504 = vpop.f32.mrb[0].mxu0
    %505 = vmatprep.mubr.f32.mxu0 0.0
    %506 = vmatmul.mubr.f32.gmra.mrb[0].mxu0 %v198
    %v507 = vpop.f32.mrb[0].mxu0
    %v508 = vadd.f32 %v122, %v507
    %v509 = vpop.f32.mrb[0].mxu0
    %510 = vmatprep.mubr.f32.mxu0 0.0
    %511 = vmatmul.mubr.f32.gmra.mrb[0].mxu0 %v201
    %v512 = vpop.f32.mrb[0].mxu0
    %v513 = vadd.f32 %v122, %v512
    %v514 = vpop.f32.mrb[0].mxu0
    %515 = vmatprep.mubr.f32.mxu0 0.0
    %516 = vmatmul.mubr.f32.gmra.mrb[0].mxu0 %v204
    %v517 = vpop.f32.mrb[0].mxu0
    %v518 = vadd.f32 %v122, %v517
    %v519 = vpop.f32.mrb[0].mxu0
    %520 = vmatprep.mubr.f32.mxu0 0.0
    %521 = vmatmul.mubr.f32.gmra.mrb[0].mxu0 %v207
    %v522 = vpop.f32.mrb[0].mxu0
    %v523 = vadd.f32 %v122, %v522
    %v524 = vpop.f32.mrb[0].mxu0
    %525 = vmatprep.mubr.f32.mxu0 0.0
    %526 = vmatmul.mubr.f32.gmra.mrb[0].mxu0 %v210
    %v527 = vpop.f32.mrb[0].mxu0
    %v528 = vadd.f32 %v122, %v527
    %v529 = vpop.f32.mrb[0].mxu0
    %530 = vmatprep.mubr.f32.mxu0 0.0
    %531 = vmatmul.mubr.f32.gmra.mrb[0].mxu0 %v213
    %v532 = vpop.f32.mrb[0].mxu0
    %v533 = vadd.f32 %v122, %v532
    %v534 = vpop.f32.mrb[0].mxu0
    %535 = vmatprep.mubr.f32.mxu0 0.0
    %536 = vmatmul.mubr.f32.gmra.mrb[0].mxu0 %v216
    %v537 = vpop.f32.mrb[0].mxu0
    %v538 = vadd.f32 %v122, %v537
    %v539 = vpop.f32.mrb[0].mxu0
    %540 = vmatprep.mubr.f32.mxu0 0.0
    %541 = vmatmul.mubr.f32.gmra.mrb[0].mxu0 %v219
    %v542 = vpop.f32.mrb[0].mxu0
    %v543 = vadd.f32 %v122, %v542
    %v544 = vpop.f32.mrb[0].mxu0
    %545 = vmatprep.mubr.f32.mxu0 0.0
    %546 = vmatmul.mubr.f32.gmra.mrb[0].mxu0 %v222
    %v547 = vpop.f32.mrb[0].mxu0
    %v548 = vadd.f32 %v122, %v547
    %v549 = vpop.f32.mrb[0].mxu0
    %550 = vmatprep.mubr.f32.mxu0 0.0
    %551 = vmatmul.mubr.f32.gmra.mrb[0].mxu0 %v225
    %v552 = vpop.f32.mrb[0].mxu0
    %v553 = vadd.f32 %v122, %v552
    %v554 = vpop.f32.mrb[0].mxu0
    %555 = vmatprep.mubr.f32.mxu0 0.0
    %556 = vmatmul.mubr.f32.gmra.mrb[0].mxu0 %v228
    %v557 = vpop.f32.mrb[0].mxu0
    %v558 = vadd.f32 %v122, %v557
    %v559 = vpop.f32.mrb[0].mxu0
    %560 = vmatprep.mubr.f32.mxu0 0.0
    %561 = vmatmul.mubr.f32.gmra.mrb[0].mxu0 %v231
    %v562 = vpop.f32.mrb[0].mxu0
    %v563 = vadd.f32 %v122, %v562
    %v564 = vpop.f32.mrb[0].mxu0
    %565 = vmatprep.mubr.f32.mxu0 0.0
    %566 = vmatmul.mubr.f32.gmra.mrb[0].mxu0 %v234
    %v567 = vpop.f32.mrb[0].mxu0
    %v568 = vadd.f32 %v122, %v567
    %v569 = vpop.f32.mrb[0].mxu0
    %570 = vmatprep.mubr.f32.mxu0 0.0
    %571 = vmatmul.mubr.f32.gmra.mrb[0].mxu0 %v237
    %v572 = vpop.f32.mrb[0].mxu0
    %v573 = vadd.f32 %v122, %v572
    %v574 = vpop.f32.mrb[0].mxu0
    %575 = vmatprep.mubr.f32.mxu0 0.0
    %576 = vmatmul.mubr.f32.gmra.mrb[0].mxu0 %v240
    %v577 = vpop.f32.mrb[0].mxu0
    %v578 = vadd.f32 %v122, %v577
    %v579 = vpop.f32.mrb[0].mxu0
    %580 = vmatprep.mubr.f32.mxu0 0.0
    %581 = vmatmul.mubr.f32.gmra.mrb[0].mxu0 %v243
    %v582 = vpop.f32.mrb[0].mxu0
    %v583 = vadd.f32 %v122, %v582
    %v584 = vpop.f32.mrb[0].mxu0
    %585 = vmatprep.mubr.f32.mxu0 0.0
    %586 = vmatmul.mubr.f32.gmra.mrb[0].mxu0 %v246
    %v587 = vpop.f32.mrb[0].mxu0
    %v588 = vadd.f32 %v122, %v587
    %v589 = vpop.f32.mrb[0].mxu0
    %590 = vmatprep.mubr.f32.mxu0 0.0
    %591 = vmatmul.mubr.f32.gmra.mrb[0].mxu0 %v249
    %v592 = vpop.f32.mrb[0].mxu0
    %v593 = vadd.f32 %v122, %v592
    %v594 = vpop.f32.mrb[0].mxu0
    %595 = vmatprep.mubr.f32.mxu0 0.0
    %596 = vmatmul.mubr.f32.gmra.mrb[0].mxu0 %v252
    %v597 = vpop.f32.mrb[0].mxu0
    %v598 = vadd.f32 %v122, %v597
    %v599 = vpop.f32.mrb[0].mxu0
    %600 = vmatprep.mubr.f32.mxu0 0.0
    %601 = vmatmul.mubr.f32.gmra.mrb[0].mxu0 %v255
    %v602 = vpop.f32.mrb[0].mxu0
    %v603 = vadd.f32 %v122, %v602
    %v604 = vpop.f32.mrb[0].mxu0
    %605 = vmatprep.mubr.f32.mxu0 0.0
    %606 = vmatmul.mubr.f32.gmra.mrb[0].mxu0 %v258
    %v607 = vpop.f32.mrb[0].mxu0
    %v608 = vadd.f32 %v122, %v607
    %v609 = vpop.f32.mrb[0].mxu0
    %610 = vmatprep.mubr.f32.mxu0 0.0
    %611 = vmatmul.mubr.f32.gmra.mrb[0].mxu0 %v261
    %v612 = vpop.f32.mrb[0].mxu0
    %v613 = vadd.f32 %v122, %v612
    %v614 = vpop.f32.mrb[0].mxu0
    %615 = vmatprep.mubr.f32.mxu0 0.0
    %616 = vmatmul.mubr.f32.gmra.mrb[0].mxu0 %v264
    %v617 = vpop.f32.mrb[0].mxu0
    %v618 = vadd.f32 %v122, %v617
    %v619 = vpop.f32.mrb[0].mxu0
    %620 = vmatprep.mubr.f32.mxu0 0.0
    %621 = vmatmul.mubr.f32.gmra.mrb[0].mxu0 %v267
    %v622 = vpop.f32.mrb[0].mxu0
    %v623 = vadd.f32 %v122, %v622
    %v624 = vpop.f32.mrb[0].mxu0
    %625 = vmatprep.mubr.f32.mxu0 0.0
    %626 = vmatmul.mubr.f32.gmra.mrb[0].mxu0 %v270
    %v627 = vpop.f32.mrb[0].mxu0
    %v628 = vadd.f32 %v122, %v627
    %v629 = vpop.f32.mrb[0].mxu0
    %630 = vmatprep.mubr.f32.mxu0 0.0
    %631 = vmatmul.mubr.f32.gmra.mrb[0].mxu0 %v273
    %v632 = vpop.f32.mrb[0].mxu0
    %v633 = vadd.f32 %v122, %v632
    %v634 = vpop.f32.mrb[0].mxu0
    %635 = vmatprep.mubr.f32.mxu0 0.0
    %636 = vmatmul.mubr.f32.gmra.mrb[0].mxu0 %v276
    %v637 = vpop.f32.mrb[0].mxu0
    %v638 = vadd.f32 %v122, %v637
    %v639 = vpop.f32.mrb[0].mxu0
    %640 = vmatprep.mubr.f32.mxu0 0.0
    %641 = vmatmul.mubr.f32.gmra.mrb[0].mxu0 %v279
    %v642 = vpop.f32.mrb[0].mxu0
    %v643 = vadd.f32 %v122, %v642
    %v644 = vpop.f32.mrb[0].mxu0
    %645 = vmatprep.mubr.f32.mxu0 0.0
    %646 = vmatmul.mubr.f32.gmra.mrb[0].mxu0 %v282
    %v647 = vpop.f32.mrb[0].mxu0
    %v648 = vadd.f32 %v122, %v647
    %v649 = vpop.f32.mrb[0].mxu0
    %650 = vmatprep.mubr.f32.mxu0 0.0
    %651 = vmatmul.mubr.f32.gmra.mrb[0].mxu0 %v285
    %v652 = vpop.f32.mrb[0].mxu0
    %v653 = vadd.f32 %v122, %v652
    %v654 = vpop.f32.mrb[0].mxu0
    %655 = vmatprep.mubr.f32.mxu0 0.0
    %656 = vmatmul.mubr.f32.gmra.mrb[0].mxu0 %v288
    %v657 = vpop.f32.mrb[0].mxu0
    %v658 = vadd.f32 %v122, %v657
    %v659 = vpop.f32.mrb[0].mxu0
    %660 = vmatprep.mubr.f32.mxu0 0.0
    %661 = vmatmul.mubr.f32.gmra.mrb[0].mxu0 %v291
    %v662 = vpop.f32.mrb[0].mxu0
    %v663 = vadd.f32 %v122, %v662
    %v664 = vpop.f32.mrb[0].mxu0
    %665 = vmatprep.mubr.f32.mxu0 0.0
    %666 = vmatmul.mubr.f32.gmra.mrb[0].mxu0 %v294
    %v667 = vpop.f32.mrb[0].mxu0
    %v668 = vadd.f32 %v122, %v667
    %v669 = vpop.f32.mrb[0].mxu0
    %670 = vmatprep.mubr.f32.mxu0 0.0
    %671 = vmatmul.mubr.f32.gmra.mrb[0].mxu0 %v297
    %v672 = vpop.f32.mrb[0].mxu0
    %v673 = vadd.f32 %v122, %v672
    %v674 = vpop.f32.mrb[0].mxu0
    %675 = vmatprep.mubr.f32.mxu0 0.0
    %676 = vmatmul.mubr.f32.gmra.mrb[0].mxu0 %v300
    %v677 = vpop.f32.mrb[0].mxu0
    %v678 = vadd.f32 %v122, %v677
    %v679 = vpop.f32.mrb[0].mxu0
    %680 = vmatprep.mubr.f32.mxu0 0.0
    %681 = vmatmul.mubr.f32.gmra.mrb[0].mxu0 %v303
    %v682 = vpop.f32.mrb[0].mxu0
    %v683 = vadd.f32 %v122, %v682
    %v684 = vpop.f32.mrb[0].mxu0
    %685 = vmatprep.mubr.f32.mxu0 0.0
    %686 = vmatmul.mubr.f32.gmra.mrb[0].mxu0 %v306
    %v687 = vpop.f32.mrb[0].mxu0
    %v688 = vadd.f32 %v122, %v687
    %v689 = vpop.f32.mrb[0].mxu0
    %690 = vmatprep.mubr.f32.mxu0 0.0
    %691 = vmatmul.mubr.f32.gmra.mrb[0].mxu0 %v309
    %v692 = vpop.f32.mrb[0].mxu0
    %v693 = vadd.f32 %v122, %v692
    %v694 = vpop.f32.mrb[0].mxu0
    %695 = vmatprep.mubr.f32.mxu0 0.0
    %696 = vmatmul.mubr.f32.gmra.mrb[0].mxu0 %v312
    %v697 = vpop.f32.mrb[0].mxu0
    %v698 = vadd.f32 %v122, %v697
    %v699 = vpop.f32.mrb[0].mxu0
    %700 = vmatprep.mubr.f32.mxu0 0.0
    %701 = vmatmul.mubr.f32.gmra.mrb[0].mxu0 %v315
    %v702 = vpop.f32.mrb[0].mxu0
    %v703 = vadd.f32 %v122, %v702
    %v704 = vpop.f32.mrb[0].mxu0
    %705 = vdwg.mxu0
    %v706 = vmax.f32 %v388, 0.0
    %v707 = vmax.f32 %v393, 0.0
    %v708 = vmax.f32 %v398, 0.0
    %v709 = vmax.f32 %v403, 0.0
    %v710 = vmax.f32 %v408, 0.0
    %v711 = vmax.f32 %v413, 0.0
    %v712 = vmax.f32 %v418, 0.0
    %v713 = vmax.f32 %v423, 0.0
    %v714 = vmax.f32 %v428, 0.0
    %v715 = vmax.f32 %v433, 0.0
    %v716 = vmax.f32 %v438, 0.0
    %v717 = vmax.f32 %v443, 0.0
    %v718 = vmax.f32 %v448, 0.0
    %v719 = vmax.f32 %v453, 0.0
    %v720 = vmax.f32 %v458, 0.0
    %v721 = vmax.f32 %v463, 0.0
    %v722 = vmax.f32 %v468, 0.0
    %v723 = vmax.f32 %v473, 0.0
    %v724 = vmax.f32 %v478, 0.0
    %v725 = vmax.f32 %v483, 0.0
    %v726 = vmax.f32 %v488, 0.0
    %v727 = vmax.f32 %v493, 0.0
    %v728 = vmax.f32 %v498, 0.0
    %v729 = vmax.f32 %v503, 0.0
    %v730 = vmax.f32 %v508, 0.0
    %v731 = vmax.f32 %v513, 0.0
    %v732 = vmax.f32 %v518, 0.0
    %v733 = vmax.f32 %v523, 0.0
    %v734 = vmax.f32 %v528, 0.0
    %v735 = vmax.f32 %v533, 0.0
    %v736 = vmax.f32 %v538, 0.0
    %v737 = vmax.f32 %v543, 0.0
    %v738 = vmax.f32 %v548, 0.0
    %v739 = vmax.f32 %v553, 0.0
    %v740 = vmax.f32 %v558, 0.0
    %v741 = vmax.f32 %v563, 0.0
    %v742 = vmax.f32 %v568, 0.0
    %v743 = vmax.f32 %v573, 0.0
    %v744 = vmax.f32 %v578, 0.0
    %v745 = vmax.f32 %v583, 0.0
    %v746 = vmax.f32 %v588, 0.0
    %v747 = vmax.f32 %v593, 0.0
    %v748 = vmax.f32 %v598, 0.0
    %v749 = vmax.f32 %v603, 0.0
    %v750 = vmax.f32 %v608, 0.0
    %v751 = vmax.f32 %v613, 0.0
    %v752 = vmax.f32 %v618, 0.0
    %v753 = vmax.f32 %v623, 0.0
    %v754 = vmax.f32 %v628, 0.0
    %v755 = vmax.f32 %v633, 0.0
    %v756 = vmax.f32 %v638, 0.0
    %v757 = vmax.f32 %v643, 0.0
    %v758 = vmax.f32 %v648, 0.0
    %v759 = vmax.f32 %v653, 0.0
    %v760 = vmax.f32 %v658, 0.0
    %v761 = vmax.f32 %v663, 0.0
    %v762 = vmax.f32 %v668, 0.0
    %v763 = vmax.f32 %v673, 0.0
    %v764 = vmax.f32 %v678, 0.0
    %v765 = vmax.f32 %v683, 0.0
    %v766 = vmax.f32 %v688, 0.0
    %v767 = vmax.f32 %v693, 0.0
    %v768 = vmax.f32 %v698, 0.0
    %v769 = vmax.f32 %v703, 0.0
    %770 = vst [vmem:[#allocation8] sm:$0xff] %v706
    %771 = vst [vmem:[#allocation8 + $0x8] sm:$0xff] %v707
    %772 = vst [vmem:[#allocation8 + $0x10] sm:$0xff] %v708
    %773 = vst [vmem:[#allocation8 + $0x18] sm:$0xff] %v709
    %774 = vst [vmem:[#allocation8 + $0x20] sm:$0xff] %v710
    %775 = vst [vmem:[#allocation8 + $0x28] sm:$0xff] %v711
    %776 = vst [vmem:[#allocation8 + $0x30] sm:$0xff] %v712
    %777 = vst [vmem:[#allocation8 + $0x38] sm:$0xff] %v713
    %778 = vst [vmem:[#allocation8 + $0x40] sm:$0xff] %v714
    %779 = vst [vmem:[#allocation8 + $0x48] sm:$0xff] %v715
    %780 = vst [vmem:[#allocation8 + $0x50] sm:$0xff] %v716
    %781 = vst [vmem:[#allocation8 + $0x58] sm:$0xff] %v717
    %782 = vst [vmem:[#allocation8 + $0x60] sm:$0xff] %v718
    %783 = vst [vmem:[#allocation8 + $0x68] sm:$0xff] %v719
    %784 = vst [vmem:[#allocation8 + $0x70] sm:$0xff] %v720
    %785 = vst [vmem:[#allocation8 + $0x78] sm:$0xff] %v721
    %786 = vst [vmem:[#allocation8 + $0x80] sm:$0xff] %v722
    %787 = vst [vmem:[#allocation8 + $0x88] sm:$0xff] %v723
    %788 = vst [vmem:[#allocation8 + $0x90] sm:$0xff] %v724
    %789 = vst [vmem:[#allocation8 + $0x98] sm:$0xff] %v725
    %790 = vst [vmem:[#allocation8 + $0xa0] sm:$0xff] %v726
    %791 = vst [vmem:[#allocation8 + $0xa8] sm:$0xff] %v727
    %792 = vst [vmem:[#allocation8 + $0xb0] sm:$0xff] %v728
    %793 = vst [vmem:[#allocation8 + $0xb8] sm:$0xff] %v729
    %794 = vst [vmem:[#allocation8 + $0xc0] sm:$0xff] %v730
    %795 = vst [vmem:[#allocation8 + $0xc8] sm:$0xff] %v731
    %796 = vst [vmem:[#allocation8 + $0xd0] sm:$0xff] %v732
    %797 = vst [vmem:[#allocation8 + $0xd8] sm:$0xff] %v733
    %798 = vst [vmem:[#allocation8 + $0xe0] sm:$0xff] %v734
    %799 = vst [vmem:[#allocation8 + $0xe8] sm:$0xff] %v735
    %800 = vst [vmem:[#allocation8 + $0xf0] sm:$0xff] %v736
    %801 = vst [vmem:[#allocation8 + $0xf8] sm:$0xff] %v737
    %802 = vst [vmem:[#allocation8 + $0x100] sm:$0xff] %v738
    %803 = vst [vmem:[#allocation8 + $0x108] sm:$0xff] %v739
    %804 = vst [vmem:[#allocation8 + $0x110] sm:$0xff] %v740
    %805 = vst [vmem:[#allocation8 + $0x118] sm:$0xff] %v741
    %806 = vst [vmem:[#allocation8 + $0x120] sm:$0xff] %v742
    %807 = vst [vmem:[#allocation8 + $0x128] sm:$0xff] %v743
    %808 = vst [vmem:[#allocation8 + $0x130] sm:$0xff] %v744
    %809 = vst [vmem:[#allocation8 + $0x138] sm:$0xff] %v745
    %810 = vst [vmem:[#allocation8 + $0x140] sm:$0xff] %v746
    %811 = vst [vmem:[#allocation8 + $0x148] sm:$0xff] %v747
    %812 = vst [vmem:[#allocation8 + $0x150] sm:$0xff] %v748
    %813 = vst [vmem:[#allocation8 + $0x158] sm:$0xff] %v749
    %814 = vst [vmem:[#allocation8 + $0x160] sm:$0xff] %v750
    %815 = vst [vmem:[#allocation8 + $0x168] sm:$0xff] %v751
    %816 = vst [vmem:[#allocation8 + $0x170] sm:$0xff] %v752
    %817 = vst [vmem:[#allocation8 + $0x178] sm:$0xff] %v753
    %818 = vst [vmem:[#allocation8 + $0x180] sm:$0xff] %v754
    %819 = vst [vmem:[#allocation8 + $0x188] sm:$0xff] %v755
    %820 = vst [vmem:[#allocation8 + $0x190] sm:$0xff] %v756
    %821 = vst [vmem:[#allocation8 + $0x198] sm:$0xff] %v757
    %822 = vst [vmem:[#allocation8 + $0x1a0] sm:$0xff] %v758
    %823 = vst [vmem:[#allocation8 + $0x1a8] sm:$0xff] %v759
    %824 = vst [vmem:[#allocation8 + $0x1b0] sm:$0xff] %v760
    %825 = vst [vmem:[#allocation8 + $0x1b8] sm:$0xff] %v761
    %826 = vst [vmem:[#allocation8 + $0x1c0] sm:$0xff] %v762
    %827 = vst [vmem:[#allocation8 + $0x1c8] sm:$0xff] %v763
    %828 = vst [vmem:[#allocation8 + $0x1d0] sm:$0xff] %v764
    %829 = vst [vmem:[#allocation8 + $0x1d8] sm:$0xff] %v765
    %830 = vst [vmem:[#allocation8 + $0x1e0] sm:$0xff] %v766
    %831 = vst [vmem:[#allocation8 + $0x1e8] sm:$0xff] %v767
    %832 = vst [vmem:[#allocation8 + $0x1f0] sm:$0xff] %v768
    %833 = vst [vmem:[#allocation8 + $0x1f8] sm:$0xff] %v769
    // Predicated region
    $region26: #{tpu_custom_call.1} parent=1 // pred_check
      _
    $region27: #{tpu_custom_call.1} parent=1 // pred_check_branch
      %835 = sbr.rel (0) target = $region29
    $region28: #{tpu_custom_call.1} parent=1 // pred_region
      %s837 = ssub.s32 8192, 8192
      %838 = vsyncadd [#allocation4], %s837
      %s839 = sshll.u32 [#allocation8], 4
      %s840 = int_to_ptr.vmem [resolvable:$true] %s839
      %845 = dma.vmem_to_hbm [thread:$0]  %s840, 8192, %s3, [#allocation4], 128, 128, 8
    $region29: #{tpu_custom_call.1} parent=1 // pred_fallthru
      _
    // Predicated region
    $region30: #{tpu_custom_call.1} parent=1 // pred_check
      _
    $region31: #{tpu_custom_call.1} parent=1 // pred_check_branch
      %847 = sbr.rel (0) target = $region33
    $region32: #{tpu_custom_call.1} parent=1 // pred_region
      %848 = dma.done [#allocation4], 8192
    $region33: #{tpu_custom_call.1} parent=1 // pred_fallthru
      _
    %849 = vsyncpa [#allocation3], 1
    %850 = vsyncpa [#allocation6], 1
    %851 = vsyncpa [#allocation4], 1

</llo_original>
